<compile_context>
chip_gen: v5e
topology: v5e:2x2
jax: 0.10.0
libtpu: 0.0.40
codegen_flags: <defaults>
</compile_context>

<pallas_src>
import math

import jax
import jax.numpy as jnp
import numpy as np
from jax.experimental import pallas as pl
from jax.experimental.pallas import tpu as pltpu


def _round_up(x, m):
    return ((x + m - 1) // m) * m


def _vmem_limit_bytes():
    """Per-chip VMEM limit with headroom (v7x only has 64 MiB physical)."""
    try:
        cap = int(pltpu.get_tpu_info().vmem_capacity_bytes)
        return int(min(max(cap - 16 * 1024 * 1024, 32 * 1024 * 1024),
                       100 * 1024 * 1024))
    except Exception:
        return 48 * 1024 * 1024  # safe on v5e / v6e / v7x


def _stft_pallas_call(xp2d, basis, *, tf, tail, grid_f, r, n_cols,
                      precision, vmem_limit):
    """xp2d: (B, rows, hop) signal view; basis: (r, hop, n_cols).

    Returns (B, grid_f*tf, n_cols) f32 with cols [0, n_freq) = real part and
    [n_freq, 2*n_freq) = imag part of the normalized, windowed DFT per frame.
    """
    b_total, rows, hop = xp2d.shape
    f_alloc = grid_f * tf

    def kernel(xm_ref, xt_ref, basis_ref, out_ref):
        # Covering span of this step's tf frames: signal rows
        # [f*tf, f*tf + tf + tail) of the (rows, hop) view.
        span = jnp.concatenate([xm_ref[0], xt_ref[0]], axis=0)   # (tf+tail, hop)
        acc = None
        # Frame j = concat of span rows j..j+r-1  =>  one small GEMM per
        # hop-chunk of the basis, accumulated in f32.  r = ceil(n_fft/hop)
        # (4 at the default hop), statically unrolled.
        for i in range(r):
            contrib = jnp.dot(span[i:i + tf, :], basis_ref[i],
                              preferred_element_type=jnp.float32,
                              precision=precision)
            acc = contrib if acc is None else acc + contrib
        out_ref[0] = acc

    flops = 2 * b_total * f_alloc * (r * hop) * n_cols
    bytes_accessed = (xp2d.size * xp2d.dtype.itemsize
                      + basis.size * basis.dtype.itemsize
                      + b_total * f_alloc * n_cols * 4)

    return pl.pallas_call(
        kernel,
        out_shape=jax.ShapeDtypeStruct((b_total, f_alloc, n_cols), jnp.float32),
        grid=(b_total, grid_f),
        in_specs=[
            # Main span rows [f*tf, (f+1)*tf): streamed, double-buffered.
            pl.BlockSpec((1, tf, hop), lambda b, f: (b, f, 0)),
            # Overlap tail rows [(f+1)*tf, (f+1)*tf + tail).
            pl.BlockSpec((1, tail, hop),
                         lambda b, f: (b, (f + 1) * (tf // tail), 0)),
            # Window-folded cos|sin basis; constant index => fetched once and
            # kept VMEM-resident across all grid steps.
            # TODO(synk): pipeline_mode=pl.Buffered(1) (and an N tile axis for
            # n_fft >= 4096 on v7x) would shrink its footprint further.
            pl.BlockSpec((r, hop, n_cols), lambda b, f: (0, 0, 0)),
        ],
        out_specs=pl.BlockSpec((1, tf, n_cols), lambda b, f: (b, f, 0)),
        compiler_params=pltpu.CompilerParams(
            dimension_semantics=("parallel", "parallel"),
            vmem_limit_bytes=vmem_limit,
        ),
        cost_estimate=pl.CostEstimate(flops=flops, transcendentals=0,
                                      bytes_accessed=bytes_accessed),
    )(xp2d, xp2d, basis)


class StftPallas:
    """JAX/Pallas port of the PyTorch Stft module."""

    def __init__(self, n_fft: int, hop=None, window=None,
                 compute_dtype=jnp.bfloat16):
        self.n_fft = int(n_fft)
        self.hop = int(hop) if hop else self.n_fft // 4
        self.compute_dtype = jnp.dtype(compute_dtype)
        if window is not None:
            w = np.asarray(window, dtype=np.float64)
            assert w.shape[0] == n_fft
        else:
            # torch.hann_window(n_fft) (periodic=True)
            n = np.arange(n_fft, dtype=np.float64)
            w = 0.5 - 0.5 * np.cos(2.0 * np.pi * n / n_fft)
        self.w = jnp.asarray(w, dtype=jnp.float32)
        self.n_freq = n_fft // 2 + 1

        # Hop decomposition: frame j (length n_fft, start j*hop) equals rows
        # j..j+r-1 of the (rows, hop) signal view; basis rows beyond n_fft are
        # zero so the decomposition is exact for any hop.
        self.r = max(1, -(-self.n_fft // self.hop))   # ceil(n_fft / hop)
        k_ext = self.r * self.hop

        # Tight fused basis: cols [0, n_freq) = w*cos/sqrt(n_fft),
        # [n_freq, 2*n_freq) = -w*sin/sqrt(n_fft); lane-padded once at the end.
        self.n_cols = _round_up(2 * self.n_freq, 128)
        n = np.arange(n_fft)[:, None].astype(np.float64)
        k = np.arange(self.n_freq)[None, :].astype(np.float64)
        ang = 2.0 * np.pi * n * k / n_fft
        norm = 1.0 / math.sqrt(n_fft)                 # normalized=True
        basis = np.zeros((k_ext, self.n_cols), np.float32)
        basis[:n_fft, : self.n_freq] = w[:, None] * np.cos(ang) * norm
        basis[:n_fft, self.n_freq: 2 * self.n_freq] = -w[:, None] * np.sin(ang) * norm
        self.basis = jnp.asarray(
            basis.reshape(self.r, self.hop, self.n_cols), dtype=self.compute_dtype)

        # Overlap tail rows (>= r-1), multiple of 16 for bf16 sublane packing.
        self.tail = _round_up(max(self.r - 1, 1), 16)
        self.precision = (jax.lax.Precision.HIGHEST
                          if self.compute_dtype == jnp.dtype(jnp.float32) else None)
        self._vmem_limit = _vmem_limit_bytes()

    def _choose_tf(self, n_frames, batch):
        """Frame-tile size: biggest that fits VMEM, then balanced to n_frames."""
        hop_lanes = _round_up(self.hop, 128)
        isz = self.compute_dtype.itemsize
        # Pallas double-buffers every BlockSpec input, including the
        # constant-index basis -> count it twice.
        basis_bytes = 2 * self.r * _round_up(self.hop, 16) * self.n_cols * isz
        budget = int(self._vmem_limit * 0.75)

        def working_set(tf):
            per_step = (tf * hop_lanes * isz + self.tail * hop_lanes * isz
                        + tf * self.n_cols * 4)
            return basis_bytes + 2 * per_step

        tf_max = 2048
        while tf_max > 2 * self.tail and working_set(tf_max) > budget:
            tf_max //= 2
        tf_max = max(self.tail, (tf_max // self.tail) * self.tail)

        # Balance tiles so padding waste is at most ~one tail per tile
        # (instead of rounding M up to a fixed large tile).
        n_tiles = -(-n_frames // tf_max)
        tf = _round_up(-(-n_frames // n_tiles), self.tail)
        # v7x has two TensorCores: keep the parallel grid at >= 2 steps.
        if batch * (-(-n_frames // tf)) < 2 and tf > 2 * self.tail:
            tf = _round_up(-(-n_frames // 2), self.tail)
        return tf

    def __call__(self, x):
        x = jnp.asarray(x, dtype=jnp.float32)
        t = x.shape[-1]
        sh = x.shape[:-1]
        pad = self.n_fft // 2
        assert t > pad, "reflect padding requires input length > n_fft // 2"

        xb = x.reshape(-1, t)
        B = xb.shape[0]
        # center=True -> reflect pad n_fft//2 on both sides (torch default).
        xp = jnp.pad(xb, ((0, 0), (pad, pad)), mode="reflect")
        t_pad = t + 2 * pad
        assert t_pad >= self.n_fft
        n_frames = 1 + (t_pad - self.n_fft) // self.hop

        tf = self._choose_tf(n_frames, B)
        grid_f = -(-n_frames // tf)
        # Zero-pad the signal so every (main, tail) input block is in-bounds;
        # the zero basis rows beyond n_fft keep the extra samples inert.
        rows_needed = max(grid_f * tf + self.tail, -(-t_pad // self.hop))
        xp = jnp.pad(xp, ((0, 0), (0, rows_needed * self.hop - t_pad)))
        xp2d = xp.astype(self.compute_dtype).reshape(B, rows_needed, self.hop)

        out = _stft_pallas_call(
            xp2d, self.basis, tf=tf, tail=self.tail, grid_f=grid_f,
            r=self.r, n_cols=self.n_cols, precision=self.precision,
            vmem_limit=self._vmem_limit)          # (B, grid_f*tf, n_cols) f32

        re = out[:, :n_frames, : self.n_freq]
        im = out[:, :n_frames, self.n_freq: 2 * self.n_freq]
        # torch.stft returns (..., freq, frames).  XLA fuses this transpose
        # into the complex-pack pass below.
        # TODO(synk): Pallas cannot emit complex64; the re/im interleave (and
        # the transpose) remain in XLA.
        re = jnp.transpose(re, (0, 2, 1))
        im = jnp.transpose(im, (0, 2, 1))
        spec = (re + 1j * im).astype(jnp.complex64)
        return spec.reshape(*sh, self.n_freq, n_frames)


def _stft_reference(x, n_fft, hop, window):
    """Pure-JAX f32 reference (no Pallas) for correctness checks."""
    x = jnp.asarray(x, dtype=jnp.float32)
    t = x.shape[-1]
    sh = x.shape[:-1]
    xb = x.reshape(-1, t)
    pad = n_fft // 2
    xp = jnp.pad(xb, ((0, 0), (pad, pad)), mode="reflect")
    num_frames = 1 + (xp.shape[-1] - n_fft) // hop
    idx = (hop * jnp.arange(num_frames))[:, None] + jnp.arange(n_fft)[None, :]
    frames = xp[:, idx] * window[None, None, :]
    spec = jnp.fft.rfft(frames, n=n_fft, axis=-1) / jnp.sqrt(n_fft)
    spec = jnp.transpose(spec, (0, 2, 1))
    return spec.reshape(*sh, n_fft // 2 + 1, num_frames).astype(jnp.complex64)


if __name__ == "__main__":
    key = jax.random.PRNGKey(0)
    k1, k2 = jax.random.split(key)

    # --- Test 1: small config, f32 compute path (torch-level accuracy) ----
    n_fft, hop = 16, 4
    B, C, T = 2, 4, 64
    x = jax.random.normal(k1, (B, C, T), dtype=jnp.float32)

    stft = StftPallas(n_fft=n_fft, hop=hop, compute_dtype=jnp.float32)
    out = jax.block_until_ready(stft(x))

    expected_shape = (B, C, n_fft // 2 + 1, 1 + T // hop)
    assert out.shape == expected_shape, (out.shape, expected_shape)
    assert out.dtype == jnp.complex64

    ref = jax.block_until_ready(_stft_reference(x, n_fft, hop, stft.w))
    assert jnp.allclose(out, ref, atol=5e-3, rtol=5e-3)

    # --- Test 2: larger frame count, default bf16 compute path ------------
    n_fft2, hop2 = 128, 32
    B2, C2, T2 = 2, 4, 8192
    x2 = jax.random.normal(k2, (B2, C2, T2), dtype=jnp.float32)

    stft2 = StftPallas(n_fft=n_fft2, hop=hop2)
    out2 = jax.block_until_ready(stft2(x2))

    expected_shape2 = (B2, C2, n_fft2 // 2 + 1, 1 + T2 // hop2)
    assert out2.shape == expected_shape2, (out2.shape, expected_shape2)
    assert out2.dtype == jnp.complex64

    ref2 = jax.block_until_ready(_stft_reference(x2, n_fft2, hop2, stft2.w))
    # bf16 MXU inputs with f32 accumulation -> ~1e-2 level agreement.
    assert jnp.allclose(out2, ref2, atol=5e-2, rtol=5e-2)

    print("KERNEL_OK")
</pallas_src>

<mosaic_0001>
module attributes {stable_mosaic.version = 11 : i64} {
  func.func @kernel(%arg0: i32, %arg1: i32, %arg2: memref<1x32x4xf32, #tpu.memory_space<vmem>>, %arg3: memref<1x16x4xf32, #tpu.memory_space<vmem>>, %arg4: memref<4x4x128xf32, #tpu.memory_space<vmem>>, %arg5: memref<1x32x128xf32, #tpu.memory_space<vmem>>) attributes {dimension_semantics = [#tpu.dimension_semantics<parallel>, #tpu.dimension_semantics<parallel>], iteration_bounds = array<i64: 8, 1>, scalar_prefetch = 0 : i64, scratch_operands = 0 : i64, tpu.core_type = #tpu.core_type<tc>, window_params = [{transform_indices = @transform_0, window_bounds = array<i64: 1, 32, 4>}, {transform_indices = @transform_1, window_bounds = array<i64: 1, 16, 4>}, {pipeline_mode = #tpu.pipeline_mode<synchronous>, transform_indices = @transform_2, window_bounds = array<i64: 4, 4, 128>}, {transform_indices = @transform_3, window_bounds = array<i64: 1, 32, 128>}]} {
    %c0 = arith.constant 0 : index
    %c0_0 = arith.constant 0 : index
    %c0_1 = arith.constant 0 : index
    %0 = vector.load %arg2[%c0, %c0_0, %c0_1] : memref<1x32x4xf32, #tpu.memory_space<vmem>>, vector<1x32x4xf32>
    %1 = vector.shape_cast %0 : vector<1x32x4xf32> to vector<32x4xf32>
    %c0_2 = arith.constant 0 : index
    %c0_3 = arith.constant 0 : index
    %c0_4 = arith.constant 0 : index
    %2 = vector.load %arg3[%c0_2, %c0_3, %c0_4] : memref<1x16x4xf32, #tpu.memory_space<vmem>>, vector<1x16x4xf32>
    %3 = vector.shape_cast %2 : vector<1x16x4xf32> to vector<16x4xf32>
    %4 = tpu.concatenate %1, %3 in 0 : vector<32x4xf32>, vector<16x4xf32> -> vector<48x4xf32>
    %5 = vector.extract_strided_slice %4 {offsets = [0, 0], sizes = [32, 4], strides = [1, 1]} : vector<48x4xf32> to vector<32x4xf32>
    %c0_5 = arith.constant 0 : index
    %c0_6 = arith.constant 0 : index
    %c0_7 = arith.constant 0 : index
    %6 = vector.load %arg4[%c0_5, %c0_6, %c0_7] : memref<4x4x128xf32, #tpu.memory_space<vmem>>, vector<1x4x128xf32>
    %7 = vector.shape_cast %6 : vector<1x4x128xf32> to vector<4x128xf32>
    %cst = arith.constant dense<0.000000e+00> : vector<32x128xf32>
    %8 = tpu.matmul %5, %7, %cst {dimension_numbers = #tpu.dot_dimension_numbers<[1], [0], [0], [1], [0, 0, 1, 1], [], []>, precision = #tpu.contract_precision<fp32>} : vector<32x4xf32>, vector<4x128xf32>, vector<32x128xf32> -> vector<32x128xf32>
    %9 = vector.extract_strided_slice %4 {offsets = [1, 0], sizes = [32, 4], strides = [1, 1]} : vector<48x4xf32> to vector<32x4xf32>
    %c1 = arith.constant 1 : index
    %c0_8 = arith.constant 0 : index
    %c0_9 = arith.constant 0 : index
    %10 = vector.load %arg4[%c1, %c0_8, %c0_9] : memref<4x4x128xf32, #tpu.memory_space<vmem>>, vector<1x4x128xf32>
    %11 = vector.shape_cast %10 : vector<1x4x128xf32> to vector<4x128xf32>
    %cst_10 = arith.constant dense<0.000000e+00> : vector<32x128xf32>
    %12 = tpu.matmul %9, %11, %cst_10 {dimension_numbers = #tpu.dot_dimension_numbers<[1], [0], [0], [1], [0, 0, 1, 1], [], []>, precision = #tpu.contract_precision<fp32>} : vector<32x4xf32>, vector<4x128xf32>, vector<32x128xf32> -> vector<32x128xf32>
    %13 = arith.addf %8, %12 : vector<32x128xf32>
    %14 = vector.extract_strided_slice %4 {offsets = [2, 0], sizes = [32, 4], strides = [1, 1]} : vector<48x4xf32> to vector<32x4xf32>
    %c2 = arith.constant 2 : index
    %c0_11 = arith.constant 0 : index
    %c0_12 = arith.constant 0 : index
    %15 = vector.load %arg4[%c2, %c0_11, %c0_12] : memref<4x4x128xf32, #tpu.memory_space<vmem>>, vector<1x4x128xf32>
    %16 = vector.shape_cast %15 : vector<1x4x128xf32> to vector<4x128xf32>
    %cst_13 = arith.constant dense<0.000000e+00> : vector<32x128xf32>
    %17 = tpu.matmul %14, %16, %cst_13 {dimension_numbers = #tpu.dot_dimension_numbers<[1], [0], [0], [1], [0, 0, 1, 1], [], []>, precision = #tpu.contract_precision<fp32>} : vector<32x4xf32>, vector<4x128xf32>, vector<32x128xf32> -> vector<32x128xf32>
    %18 = arith.addf %13, %17 : vector<32x128xf32>
    %19 = vector.extract_strided_slice %4 {offsets = [3, 0], sizes = [32, 4], strides = [1, 1]} : vector<48x4xf32> to vector<32x4xf32>
    %c3 = arith.constant 3 : index
    %c0_14 = arith.constant 0 : index
    %c0_15 = arith.constant 0 : index
    %20 = vector.load %arg4[%c3, %c0_14, %c0_15] : memref<4x4x128xf32, #tpu.memory_space<vmem>>, vector<1x4x128xf32>
    %21 = vector.shape_cast %20 : vector<1x4x128xf32> to vector<4x128xf32>
    %cst_16 = arith.constant dense<0.000000e+00> : vector<32x128xf32>
    %22 = tpu.matmul %19, %21, %cst_16 {dimension_numbers = #tpu.dot_dimension_numbers<[1], [0], [0], [1], [0, 0, 1, 1], [], []>, precision = #tpu.contract_precision<fp32>} : vector<32x4xf32>, vector<4x128xf32>, vector<32x128xf32> -> vector<32x128xf32>
    %23 = arith.addf %18, %22 : vector<32x128xf32>
    %c0_17 = arith.constant 0 : index
    %c0_18 = arith.constant 0 : index
    %c0_19 = arith.constant 0 : index
    %24 = vector.load %arg5[%c0_17, %c0_18, %c0_19] : memref<1x32x128xf32, #tpu.memory_space<vmem>>, vector<1x32x128xf32>
    %25 = vector.shape_cast %24 : vector<1x32x128xf32> to vector<32x128xf32>
    %26 = vector.shape_cast %23 : vector<32x128xf32> to vector<1x32x128xf32>
    tpu.vector_store %arg5[%c0_17, %c0_18, %c0_19], %26 {strides = array<i32>} : memref<1x32x128xf32, #tpu.memory_space<vmem>>, vector<1x32x128xf32>,
    return
  }
  func.func @transform_0(%arg0: i32, %arg1: i32) -> (i32, i32, i32) {
    %c0_i32 = arith.constant 0 : i32
    %c0_i32_0 = arith.constant 0 : i32
    return %arg0, %arg1, %c0_i32 : i32, i32, i32
  }
  func.func @transform_1(%arg0: i32, %arg1: i32) -> (i32, i32, i32) {
    %c1_i32 = arith.constant 1 : i32
    %0 = arith.addi %arg1, %c1_i32 : i32
    %c2_i32 = arith.constant 2 : i32
    %1 = arith.muli %0, %c2_i32 : i32
    %c0_i32 = arith.constant 0 : i32
    %c0_i32_0 = arith.constant 0 : i32
    return %arg0, %1, %c0_i32 : i32, i32, i32
  }
  func.func @transform_2(%arg0: i32, %arg1: i32) -> (i32, i32, i32) {
    %c0_i32 = arith.constant 0 : i32
    %c0_i32_0 = arith.constant 0 : i32
    %c0_i32_1 = arith.constant 0 : i32
    %c0_i32_2 = arith.constant 0 : i32
    return %c0_i32, %c0_i32_0, %c0_i32_1 : i32, i32, i32
  }
  func.func @transform_3(%arg0: i32, %arg1: i32) -> (i32, i32, i32) {
    %c0_i32 = arith.constant 0 : i32
    %c0_i32_0 = arith.constant 0 : i32
    return %arg0, %arg1, %c0_i32 : i32, i32, i32
  }
}

</mosaic_0001>

<llo_original>
// kernel: tpu_custom_call.1
$region0: #{tpu_custom_call.1}
  #allocation0 [shape = 'u32[]', space=smem, size = 0x4, offset = 0x4, fixed_abs, tag = 'smem constant byte address 0x4 - core index']
  #allocation1 [shape = 'u32[72,128]{1,0:T(1,128)}', space=vmem, size = 0x9000, scoped, tag = 'internal scratch']
  %s0 = inlined_call_operand.vmem [shape: f32[8,48,4], index: 0, kind: input, shape index: {}]
  %s1 = inlined_call_operand.vmem [shape: f32[8,48,4], index: 1, kind: input, shape index: {}]
  %s2 = inlined_call_operand.vmem [shape: f32[4,4,128], index: 2, kind: input, shape index: {}]
  %s3 = inlined_call_operand.hbm [shape: f32[8,32,128], index: 3, kind: output, shape index: {}]
  %s4 = sld [smem:[#allocation0]]
  $region45: #{tpu_custom_call.1} parent=0
    _
  %s6 = ssub.s32 1, %s4
  %s7 = scalar_select 0, %s6, %s4
  $region1: #{tpu_custom_call.1} parent=0
    #allocation2 [shape = 'u8[32768]{0}', space=vmem, size = 0x8000, scoped, tag = 'output window, operand 0']
    #allocation3 [shape = 's32[2]{0}', space=sflag, size = 0x8, scoped, tag = 'scoped memory for tpu_custom_call.1']
    %8 = vsyncpa [#allocation3], 0
    %s9 = scalar_lea.sflag [#allocation3], 1
    %10 = vsyncpa %s9, 0
    loop: start=0, step=1, limit=10
    $region2: #{tpu_custom_call.1} parent=1 // loop_pre_header
      _
    $region3: #{tpu_custom_call.1} parent=1 // loop_header
      %s12 = sphi 0, %s16
      %p13 = scmp.ge.s32.totalorder %s12, 10
      %s19 = sphi 0, %s31
      %s20 = sphi 0, %s27
      %s21 = sphi 0, %s19
      %s22 = sphi 0, %s20
      %s23 = sphi 0, %s21
      %s24 = sphi 0, %s22
      %s36 = sphi 0, %s38
      %s39 = sphi 0, %s36
      %s40 = sphi 0, %s39
      %s56 = sphi 0, %s40
      %s68 = sphi 0, %s70
      %s71 = sphi 0, %s68
      %s72 = sphi 0, %s71
      %s88 = sphi 0, %s72
      %s92 = sphi 0, %s92
      %s94 = sphi 0, %s92
      %s95 = sphi 0, %s94
      %s109 = sphi 0, %s95
      %s117 = sphi 0, %s119
      %s120 = sphi 0, %s117
      %s121 = sphi 0, %s120
      %s137 = sphi 0, %s121
    $region4: #{tpu_custom_call.1} parent=1 // loop_header_branch
      %15 = sbr.rel (%p13) target = $region8
    $region5: #{tpu_custom_call.1} parent=1 // loop_body
      %s17 = ssub.s32 %s12, 1
      %s18 = ssub.s32 %s12, 2
      %s25 = sadd.s32 1, %s20
      %p26 = scmp.ge.s32.totalorder %s25, 1
      %s27 = scalar_select %p26, 0, %s25
      %s28 = sadd.s32 1, %s19
      %s29 = scalar_select %p26, %s28, %s19
      %p30 = scmp.ge.s32.totalorder %s29, 8
      %s31 = scalar_select %p30, 0, %s29
      %s32 = ssub.s32 %s19, %s31
      %s33 = ssub.s32 %s20, %s27
      %s34 = sor.u32 %s32, %s33
      %p35 = scmp.eq.s32.totalorder %s34, 0
      %s37 = sadd.s32 %s36, 1
      %s38 = scalar_select %p35, %s36, %s37
      %p41 = pneg %p35
      %p42 = scmp.eq.s32.totalorder %s12, 7
      %p43 = por %p41, %p42
      %p44 = scmp.ne.s32.totalorder %s36, %s39
      %p45 = scmp.eq.s32.totalorder %s12, 0
      %p46 = por %p44, %p45
      %p47 = scmp.ne.s32.totalorder %s36, %s39
      %p48 = scmp.eq.s32.totalorder %s17, 7
      %p49 = por %p47, %p48
      %p50 = scmp.ne.s32.totalorder %s39, %s40
      %p51 = scmp.eq.s32.totalorder %s17, 0
      %p52 = por %p50, %p51
      %p53 = scmp.ne.s32.totalorder %s39, %s40
      %p54 = scmp.eq.s32.totalorder %s18, 7
      %p55 = por %p53, %p54
      %p57 = scmp.ne.s32.totalorder %s40, %s56
      %p58 = scmp.eq.s32.totalorder %s18, 0
      %p59 = por %p57, %p58
      %s60 = sadd.s32 %s20, 1
      %s61 = smul.u32 %s60, 2
      %s62 = sadd.s32 %s27, 1
      %s63 = smul.u32 %s62, 2
      %s64 = ssub.s32 %s19, %s31
      %s65 = ssub.s32 %s61, %s63
      %s66 = sor.u32 %s64, %s65
      %p67 = scmp.eq.s32.totalorder %s66, 0
      %s69 = sadd.s32 %s68, 1
      %s70 = scalar_select %p67, %s68, %s69
      %p73 = pneg %p67
      %p74 = scmp.eq.s32.totalorder %s12, 7
      %p75 = por %p73, %p74
      %p76 = scmp.ne.s32.totalorder %s68, %s71
      %p77 = scmp.eq.s32.totalorder %s12, 0
      %p78 = por %p76, %p77
      %p79 = scmp.ne.s32.totalorder %s68, %s71
      %p80 = scmp.eq.s32.totalorder %s17, 7
      %p81 = por %p79, %p80
      %p82 = scmp.ne.s32.totalorder %s71, %s72
      %p83 = scmp.eq.s32.totalorder %s17, 0
      %p84 = por %p82, %p83
      %p85 = scmp.ne.s32.totalorder %s71, %s72
      %p86 = scmp.eq.s32.totalorder %s18, 7
      %p87 = por %p85, %p86
      %p89 = scmp.ne.s32.totalorder %s72, %s88
      %p90 = scmp.eq.s32.totalorder %s18, 0
      %p91 = por %p89, %p90
      %s93 = sadd.s32 %s92, 1
      %p96 = scmp.eq.s32.totalorder %s12, 7
      %p97 = scmp.ne.s32.totalorder %s92, %s94
      %p98 = scmp.eq.s32.totalorder %s12, 0
      %p99 = por %p97, %p98
      %p100 = scmp.ne.s32.totalorder %s92, %s94
      %p101 = scmp.eq.s32.totalorder %s17, 7
      %p102 = por %p100, %p101
      %p103 = scmp.ne.s32.totalorder %s94, %s95
      %p104 = scmp.eq.s32.totalorder %s17, 0
      %p105 = por %p103, %p104
      %p106 = scmp.ne.s32.totalorder %s94, %s95
      %p107 = scmp.eq.s32.totalorder %s18, 7
      %p108 = por %p106, %p107
      %p110 = scmp.ne.s32.totalorder %s95, %s109
      %p111 = scmp.eq.s32.totalorder %s18, 0
      %p112 = por %p110, %p111
      %s113 = ssub.s32 %s19, %s31
      %s114 = ssub.s32 %s20, %s27
      %s115 = sor.u32 %s113, %s114
      %p116 = scmp.eq.s32.totalorder %s115, 0
      %s118 = sadd.s32 %s117, 1
      %s119 = scalar_select %p116, %s117, %s118
      %p122 = pneg %p116
      %p123 = scmp.eq.s32.totalorder %s12, 7
      %p124 = por %p122, %p123
      %p125 = scmp.ne.s32.totalorder %s117, %s120
      %p126 = scmp.eq.s32.totalorder %s12, 0
      %p127 = por %p125, %p126
      %p128 = scmp.ne.s32.totalorder %s117, %s120
      %p129 = scmp.eq.s32.totalorder %s17, 7
      %p130 = por %p128, %p129
      %p131 = scmp.ne.s32.totalorder %s120, %s121
      %p132 = scmp.eq.s32.totalorder %s17, 0
      %p133 = por %p131, %p132
      %p134 = scmp.ne.s32.totalorder %s120, %s121
      %p135 = scmp.eq.s32.totalorder %s18, 7
      %p136 = por %p134, %p135
      %p138 = scmp.ne.s32.totalorder %s121, %s137
      %p139 = scmp.eq.s32.totalorder %s18, 0
      %p140 = por %p138, %p139
      %p141 = scmp.le.s32.totalorder 1, %s12
      %p142 = scmp.lt.s32.totalorder %s12, 9
      %p143 = pnand %p141, %p142
      %p144 = pneg %p143
      // Predicated region
      $region9: #{tpu_custom_call.1} parent=5 // pred_check
        _
      $region10: #{tpu_custom_call.1} parent=5 // pred_check_branch
        %146 = sbr.rel (%p143) target = $region12
      $region11: #{tpu_custom_call.1} parent=5 // pred_region
        %s147 = ssub.s32 %s12, 1
        // Predicated region
        $region13: #{tpu_custom_call.1} parent=11 // pred_check
          %p148 = pneg %p105
        $region14: #{tpu_custom_call.1} parent=11 // pred_check_branch
          %150 = sbr.rel (%p148) target = $region16
        $region15: #{tpu_custom_call.1} parent=11 // pred_region
          _
        $region16: #{tpu_custom_call.1} parent=11 // pred_fallthru
          _
      $region12: #{tpu_custom_call.1} parent=5 // pred_fallthru
        _
      %p151 = scmp.lt.s32.totalorder %s12, 8
      // Predicated region
      $region17: #{tpu_custom_call.1} parent=5 // pred_check
        %p152 = pneg %p151
      $region18: #{tpu_custom_call.1} parent=5 // pred_check_branch
        %154 = sbr.rel (%p152) target = $region20
      $region19: #{tpu_custom_call.1} parent=5 // pred_region
        // Predicated region
        $region21: #{tpu_custom_call.1} parent=19 // pred_check
          %p155 = pneg %p46
        $region22: #{tpu_custom_call.1} parent=19 // pred_check_branch
          %157 = sbr.rel (%p155) target = $region24
        $region23: #{tpu_custom_call.1} parent=19 // pred_region
          %s158 = smul.u32 4, %s20
          %s159 = ssub.s32 6, %s158
          %p160 = scmp.lt.s32.totalorder %s159, 4
          %s161 = scalar_select %p160, %s159, 4
          %s162 = smul.u32 8, %s161
          %p163 = scmp.lt.s32.totalorder %s19, 7
          %s164 = scalar_select %p163, %s19, 7
          %p165 = scmp.lt.s32.totalorder %s158, 5
          %s166 = scalar_select %p165, %s158, 5
          %s167 = smul.addr %s164, 6
          %s168 = sadd.s32 %s166, %s167
          %s169 = smul.addr %s168, 8
          %s170 = scalar_lea.vmem %s0, %s169
          %s171 = smul.u32 4, %s20
          %s172 = ssub.s32 6, %s171
          %p173 = scmp.lt.s32.totalorder %s172, 4
          %s174 = scalar_select %p173, %s172, 4
          %s175 = smul.u32 8, %s174
        $region24: #{tpu_custom_call.1} parent=19 // pred_fallthru
          _
        // Predicated region
        $region25: #{tpu_custom_call.1} parent=19 // pred_check
          %p176 = pneg %p78
        $region26: #{tpu_custom_call.1} parent=19 // pred_check_branch
          %178 = sbr.rel (%p176) target = $region28
        $region27: #{tpu_custom_call.1} parent=19 // pred_region
          %s179 = sadd.s32 %s20, 1
          %s180 = smul.u32 %s179, 2
          %s181 = smul.u32 2, %s180
          %p182 = scmp.lt.s32.totalorder %s19, 7
          %s183 = scalar_select %p182, %s19, 7
          %p184 = scmp.lt.s32.totalorder %s181, 5
          %s185 = scalar_select %p184, %s181, 5
          %s186 = smul.addr %s183, 6
          %s187 = sadd.s32 %s185, %s186
          %s188 = smul.addr %s187, 8
          %s189 = scalar_lea.vmem %s1, %s188
          %s190 = sadd.s32 %s20, 1
          %s191 = smul.u32 %s190, 2
          %s192 = smul.u32 2, %s191
        $region28: #{tpu_custom_call.1} parent=19 // pred_fallthru
          _
      $region20: #{tpu_custom_call.1} parent=5 // pred_fallthru
        _
      %p193 = scmp.le.s32.totalorder 1, %s12
      %p194 = scmp.lt.s32.totalorder %s12, 9
      %p195 = pnand %p193, %p194
      %p196 = pneg %p195
      // Predicated region
      $region29: #{tpu_custom_call.1} parent=5 // pred_check
        _
      $region30: #{tpu_custom_call.1} parent=5 // pred_check_branch
        %198 = sbr.rel (%p195) target = $region32
      $region31: #{tpu_custom_call.1} parent=5 // pred_region
        %s199 = ssub.s32 %s12, 1
        %s200 = smul.u32 4, %s22
        %s201 = ssub.s32 6, %s200
        %p202 = scmp.lt.s32.totalorder %s201, 4
        %s203 = scalar_select %p202, %s201, 4
        %s204 = smul.u32 8, %s203
        %p205 = scmp.lt.s32.totalorder %s21, 7
        %s206 = scalar_select %p205, %s21, 7
        %p207 = scmp.lt.s32.totalorder %s200, 5
        %s208 = scalar_select %p207, %s200, 5
        %s209 = smul.addr %s206, 6
        %s210 = sadd.s32 %s208, %s209
        %s211 = smul.addr %s210, 8
        %s212 = scalar_lea.vmem %s0, %s211
        %p213 = pneg %p52
        %p214 = pneg %p49
        %s215 = sadd.s32 %s22, 1
        %s216 = smul.u32 %s215, 2
        %s217 = smul.u32 2, %s216
        %p218 = scmp.lt.s32.totalorder %s21, 7
        %s219 = scalar_select %p218, %s21, 7
        %p220 = scmp.lt.s32.totalorder %s217, 5
        %s221 = scalar_select %p220, %s217, 5
        %s222 = smul.addr %s219, 6
        %s223 = sadd.s32 %s221, %s222
        %s224 = smul.addr %s223, 8
        %s225 = scalar_lea.vmem %s1, %s224
        %p226 = pneg %p84
        %p227 = pneg %p81
        %p228 = pneg %p105
        %p229 = pneg %p102
        %p230 = pneg %p133
        %p231 = pneg %p130
        %s232 = sand.u32 %s120, 1
        %s233 = scalar_lea.sflag [#allocation3], %s232
        %s234 = sand.u32 %s120, 1
        %s235 = smul.addr %s234, 32
        %s236 = scalar_lea.vmem [#allocation2], %s235
        %s237 = smul.u32 4, %s22
        %s238 = ssub.s32 6, %s237
        %p239 = scmp.lt.s32.totalorder %s238, 4
        %s240 = scalar_select %p239, %s238, 4
        %s241 = smul.u32 8, %s240
        %p242 = scmp.lt.s32.totalorder %s21, 7
        %s243 = scalar_select %p242, %s21, 7
        %p244 = scmp.lt.s32.totalorder %s237, 5
        %s245 = scalar_select %p244, %s237, 5
        %s246 = smul.addr %s243, 6
        %s247 = sadd.s32 %s245, %s246
        %s248 = smul.addr %s247, 8
        %s249 = scalar_lea.vmem %s0, %s248
        %s250 = smul.u32 4, %s22
        %s251 = ssub.s32 6, %s250
        %p252 = scmp.lt.s32.totalorder %s251, 4
        %s253 = scalar_select %p252, %s251, 4
        %s254 = smul.u32 8, %s253
        %s255 = sadd.s32 %s22, 1
        %s256 = smul.u32 %s255, 2
        %s257 = smul.u32 2, %s256
        %p258 = scmp.lt.s32.totalorder %s21, 7
        %s259 = scalar_select %p258, %s21, 7
        %p260 = scmp.lt.s32.totalorder %s257, 5
        %s261 = scalar_select %p260, %s257, 5
        %s262 = smul.addr %s259, 6
        %s263 = sadd.s32 %s261, %s262
        %s264 = smul.addr %s263, 8
        %s265 = scalar_lea.vmem %s1, %s264
        %s266 = sadd.s32 %s22, 1
        %s267 = smul.u32 %s266, 2
        %s268 = smul.u32 2, %s267
        %s269 = smul.u32 4, %s22
        %v270 = vld [vmem:[%s249] sm:$0xff]
        %v271 = vld [vmem:[%s249 + $0x8] sm:$0xff]
        %v272 = vld [vmem:[%s249 + $0x10] sm:$0xff]
        %v273 = vld [vmem:[%s249 + $0x18] sm:$0xff]
        %v274 = vld [vmem:[%s265] sm:$0xff]
        %v275 = vld [vmem:[%s2] sm:$0xf]
        %s276 = scalar_lea.vmem %s2, 4
        %v277 = vld [vmem:[%s276] sm:$0xf]
        %vm283 = vcmask 1046528
        %v284 = vrot.slane %v270, 1
        %v285 = vrot.slane %v271, 1
        %v286 = vsel %vm283, %v284, %v285
        %v287 = vrot.slane %v272, 1
        %v288 = vsel %vm283, %v285, %v287
        %v289 = vrot.slane %v273, 1
        %v290 = vsel %vm283, %v287, %v289
        %v291 = vrot.slane %v274, 1
        %v292 = vsel %vm283, %v289, %v291
        %vm293 = vcmask 31744
        %v294 = vsel %vm293, %v286, 0
        %v296 = vsel %vm293, %v288, 0
        %v298 = vsel %vm293, %v290, 0
        %v300 = vsel %vm293, %v292, 0
        %vm302 = vcmask 1043456
        %v304 = vsel %vm302, %v277, 0
        %306 = vmatpush.msra.mxu0 0.0
        %307 = vmatpush.msra.mxu0 0.0
        %308 = vmatpush.msra.mxu0 0.0
        %309 = vmatpush.msra.mxu0 0.0
        %310 = vmatpush.msra.mxu0 0.0
        %311 = vmatpush.msra.mxu0 0.0
        %312 = vmatpush.msra.mxu0 0.0
        %313 = vmatpush.msra.mxu0 0.0
        %314 = vmatpush.msra.mxu0 0.0
        %315 = vmatpush.msra.mxu0 0.0
        %316 = vmatpush.msra.mxu0 0.0
        %317 = vmatpush.msra.mxu0 0.0
        %318 = vmatpush.msra.mxu0 0.0
        %319 = vmatpush.msra.mxu0 0.0
        %320 = vmatpush.msra.mxu0 0.0
        %v321 = vand.u32 %v304, 4294901760
        %322 = vmatpush.msra.mxu0 %v321
        %v323 = vand.u32 %v294, 4294901760
        %v324 = vsub.f32 %v294, %v323
        %v325 = vand.u32 %v324, 4294901760
        %v326 = vsub.f32 %v324, %v325
        %v327 = vand.u32 %v326, 4294901760
        %328 = vmatmul.f32.gmra.mxu0 %v327
        %v329 = vpop.f32.mrf.mxu0
        %v330 = vadd.f32 0.0, %v329
        %v331 = vand.u32 %v296, 4294901760
        %v332 = vsub.f32 %v296, %v331
        %v333 = vand.u32 %v332, 4294901760
        %v334 = vsub.f32 %v332, %v333
        %v335 = vand.u32 %v334, 4294901760
        %336 = vmatmul.f32.gmra.mxu0 %v335
        %v337 = vpop.f32.mrf.mxu0
        %v338 = vadd.f32 0.0, %v337
        %v339 = vand.u32 %v298, 4294901760
        %v340 = vsub.f32 %v298, %v339
        %v341 = vand.u32 %v340, 4294901760
        %v342 = vsub.f32 %v340, %v341
        %v343 = vand.u32 %v342, 4294901760
        %344 = vmatmul.f32.gmra.mxu0 %v343
        %v345 = vpop.f32.mrf.mxu0
        %v346 = vadd.f32 0.0, %v345
        %v347 = vand.u32 %v300, 4294901760
        %v348 = vsub.f32 %v300, %v347
        %v349 = vand.u32 %v348, 4294901760
        %v350 = vsub.f32 %v348, %v349
        %v351 = vand.u32 %v350, 4294901760
        %352 = vmatmul.f32.gmra.mxu0 %v351
        %v353 = vpop.f32.mrf.mxu0
        %v354 = vadd.f32 0.0, %v353
        %355 = vdwg.mxu0
        %356 = vmatpush.msra.mxu0 0.0
        %357 = vmatpush.msra.mxu0 0.0
        %358 = vmatpush.msra.mxu0 0.0
        %359 = vmatpush.msra.mxu0 0.0
        %360 = vmatpush.msra.mxu0 0.0
        %361 = vmatpush.msra.mxu0 0.0
        %362 = vmatpush.msra.mxu0 0.0
        %363 = vmatpush.msra.mxu0 0.0
        %364 = vmatpush.msra.mxu0 0.0
        %365 = vmatpush.msra.mxu0 0.0
        %366 = vmatpush.msra.mxu0 0.0
        %367 = vmatpush.msra.mxu0 0.0
        %368 = vmatpush.msra.mxu0 0.0
        %369 = vmatpush.msra.mxu0 0.0
        %370 = vmatpush.msra.mxu0 0.0
        %v371 = vand.u32 %v304, 4294901760
        %v372 = vsub.f32 %v304, %v371
        %v373 = vand.u32 %v372, 4294901760
        %v374 = vsub.f32 %v372, %v373
        %v375 = vand.u32 %v374, 4294901760
        %376 = vmatpush.msra.mxu0 %v375
        %v377 = vand.u32 %v294, 4294901760
        %378 = vmatmul.f32.gmra.mxu0 %v377
        %v379 = vpop.f32.mrf.mxu0
        %v380 = vadd.f32 %v330, %v379
        %v381 = vand.u32 %v296, 4294901760
        %382 = vmatmul.f32.gmra.mxu0 %v381
        %v383 = vpop.f32.mrf.mxu0
        %v384 = vadd.f32 %v338, %v383
        %v385 = vand.u32 %v298, 4294901760
        %386 = vmatmul.f32.gmra.mxu0 %v385
        %v387 = vpop.f32.mrf.mxu0
        %v388 = vadd.f32 %v346, %v387
        %v389 = vand.u32 %v300, 4294901760
        %390 = vmatmul.f32.gmra.mxu0 %v389
        %v391 = vpop.f32.mrf.mxu0
        %v392 = vadd.f32 %v354, %v391
        %393 = vdwg.mxu0
        %394 = vmatpush.msra.mxu0 0.0
        %395 = vmatpush.msra.mxu0 0.0
        %396 = vmatpush.msra.mxu0 0.0
        %397 = vmatpush.msra.mxu0 0.0
        %398 = vmatpush.msra.mxu0 0.0
        %399 = vmatpush.msra.mxu0 0.0
        %400 = vmatpush.msra.mxu0 0.0
        %401 = vmatpush.msra.mxu0 0.0
        %402 = vmatpush.msra.mxu0 0.0
        %403 = vmatpush.msra.mxu0 0.0
        %404 = vmatpush.msra.mxu0 0.0
        %405 = vmatpush.msra.mxu0 0.0
        %406 = vmatpush.msra.mxu0 0.0
        %407 = vmatpush.msra.mxu0 0.0
        %408 = vmatpush.msra.mxu0 0.0
        %v409 = vand.u32 %v304, 4294901760
        %v410 = vsub.f32 %v304, %v409
        %411 = vmatpush.msra.mxu0 %v410
        %v412 = vand.u32 %v294, 4294901760
        %v413 = vsub.f32 %v294, %v412
        %414 = vmatmul.f32.gmra.mxu0 %v413
        %v415 = vpop.f32.mrf.mxu0
        %v416 = vadd.f32 %v380, %v415
        %v417 = vand.u32 %v296, 4294901760
        %v418 = vsub.f32 %v296, %v417
        %419 = vmatmul.f32.gmra.mxu0 %v418
        %v420 = vpop.f32.mrf.mxu0
        %v421 = vadd.f32 %v384, %v420
        %v422 = vand.u32 %v298, 4294901760
        %v423 = vsub.f32 %v298, %v422
        %424 = vmatmul.f32.gmra.mxu0 %v423
        %v425 = vpop.f32.mrf.mxu0
        %v426 = vadd.f32 %v388, %v425
        %v427 = vand.u32 %v300, 4294901760
        %v428 = vsub.f32 %v300, %v427
        %429 = vmatmul.f32.gmra.mxu0 %v428
        %v430 = vpop.f32.mrf.mxu0
        %v431 = vadd.f32 %v392, %v430
        %432 = vdwg.mxu0
        %433 = vmatpush.msra.mxu0 0.0
        %434 = vmatpush.msra.mxu0 0.0
        %435 = vmatpush.msra.mxu0 0.0
        %436 = vmatpush.msra.mxu0 0.0
        %437 = vmatpush.msra.mxu0 0.0
        %438 = vmatpush.msra.mxu0 0.0
        %439 = vmatpush.msra.mxu0 0.0
        %440 = vmatpush.msra.mxu0 0.0
        %441 = vmatpush.msra.mxu0 0.0
        %442 = vmatpush.msra.mxu0 0.0
        %443 = vmatpush.msra.mxu0 0.0
        %444 = vmatpush.msra.mxu0 0.0
        %445 = vmatpush.msra.mxu0 0.0
        %446 = vmatpush.msra.mxu0 0.0
        %447 = vmatpush.msra.mxu0 0.0
        %v448 = vand.u32 %v304, 4294901760
        %449 = vmatpush.msra.mxu0 %v448
        %v450 = vand.u32 %v294, 4294901760
        %v451 = vsub.f32 %v294, %v450
        %v452 = vand.u32 %v451, 4294901760
        %453 = vmatmul.f32.gmra.mxu0 %v452
        %v454 = vpop.f32.mrf.mxu0
        %v455 = vadd.f32 %v416, %v454
        %v456 = vand.u32 %v296, 4294901760
        %v457 = vsub.f32 %v296, %v456
        %v458 = vand.u32 %v457, 4294901760
        %459 = vmatmul.f32.gmra.mxu0 %v458
        %v460 = vpop.f32.mrf.mxu0
        %v461 = vadd.f32 %v421, %v460
        %v462 = vand.u32 %v298, 4294901760
        %v463 = vsub.f32 %v298, %v462
        %v464 = vand.u32 %v463, 4294901760
        %465 = vmatmul.f32.gmra.mxu0 %v464
        %v466 = vpop.f32.mrf.mxu0
        %v467 = vadd.f32 %v426, %v466
        %v468 = vand.u32 %v300, 4294901760
        %v469 = vsub.f32 %v300, %v468
        %v470 = vand.u32 %v469, 4294901760
        %471 = vmatmul.f32.gmra.mxu0 %v470
        %v472 = vpop.f32.mrf.mxu0
        %v473 = vadd.f32 %v431, %v472
        %474 = vdwg.mxu0
        %475 = vmatpush.msra.mxu0 0.0
        %476 = vmatpush.msra.mxu0 0.0
        %477 = vmatpush.msra.mxu0 0.0
        %478 = vmatpush.msra.mxu0 0.0
        %479 = vmatpush.msra.mxu0 0.0
        %480 = vmatpush.msra.mxu0 0.0
        %481 = vmatpush.msra.mxu0 0.0
        %482 = vmatpush.msra.mxu0 0.0
        %483 = vmatpush.msra.mxu0 0.0
        %484 = vmatpush.msra.mxu0 0.0
        %485 = vmatpush.msra.mxu0 0.0
        %486 = vmatpush.msra.mxu0 0.0
        %487 = vmatpush.msra.mxu0 0.0
        %488 = vmatpush.msra.mxu0 0.0
        %489 = vmatpush.msra.mxu0 0.0
        %v490 = vand.u32 %v304, 4294901760
        %v491 = vsub.f32 %v304, %v490
        %v492 = vand.u32 %v491, 4294901760
        %493 = vmatpush.msra.mxu0 %v492
        %v494 = vand.u32 %v294, 4294901760
        %495 = vmatmul.f32.gmra.mxu0 %v494
        %v496 = vpop.f32.mrf.mxu0
        %v497 = vadd.f32 %v455, %v496
        %v498 = vand.u32 %v296, 4294901760
        %499 = vmatmul.f32.gmra.mxu0 %v498
        %v500 = vpop.f32.mrf.mxu0
        %v501 = vadd.f32 %v461, %v500
        %v502 = vand.u32 %v298, 4294901760
        %503 = vmatmul.f32.gmra.mxu0 %v502
        %v504 = vpop.f32.mrf.mxu0
        %v505 = vadd.f32 %v467, %v504
        %v506 = vand.u32 %v300, 4294901760
        %507 = vmatmul.f32.gmra.mxu0 %v506
        %v508 = vpop.f32.mrf.mxu0
        %v509 = vadd.f32 %v473, %v508
        %510 = vdwg.mxu0
        %511 = vmatpush.msra.mxu0 0.0
        %512 = vmatpush.msra.mxu0 0.0
        %513 = vmatpush.msra.mxu0 0.0
        %514 = vmatpush.msra.mxu0 0.0
        %515 = vmatpush.msra.mxu0 0.0
        %516 = vmatpush.msra.mxu0 0.0
        %517 = vmatpush.msra.mxu0 0.0
        %518 = vmatpush.msra.mxu0 0.0
        %519 = vmatpush.msra.mxu0 0.0
        %520 = vmatpush.msra.mxu0 0.0
        %521 = vmatpush.msra.mxu0 0.0
        %522 = vmatpush.msra.mxu0 0.0
        %523 = vmatpush.msra.mxu0 0.0
        %524 = vmatpush.msra.mxu0 0.0
        %525 = vmatpush.msra.mxu0 0.0
        %v526 = vand.u32 %v304, 4294901760
        %527 = vmatpush.msra.mxu0 %v526
        %v528 = vand.u32 %v294, 4294901760
        %529 = vmatmul.f32.gmra.mxu0 %v528
        %v530 = vpop.f32.mrf.mxu0
        %v531 = vadd.f32 %v497, %v530
        %v532 = vand.u32 %v296, 4294901760
        %533 = vmatmul.f32.gmra.mxu0 %v532
        %v534 = vpop.f32.mrf.mxu0
        %v535 = vadd.f32 %v501, %v534
        %v536 = vand.u32 %v298, 4294901760
        %537 = vmatmul.f32.gmra.mxu0 %v536
        %v538 = vpop.f32.mrf.mxu0
        %v539 = vadd.f32 %v505, %v538
        %v540 = vand.u32 %v300, 4294901760
        %541 = vmatmul.f32.gmra.mxu0 %v540
        %v542 = vpop.f32.mrf.mxu0
        %v543 = vadd.f32 %v509, %v542
        %544 = vdwg.mxu0
        %v545 = vsel %vm293, %v270, 0
        %v547 = vsel %vm293, %v271, 0
        %v549 = vsel %vm293, %v272, 0
        %v551 = vsel %vm293, %v273, 0
        %v554 = vsel %vm302, %v275, 0
        %556 = vmatpush.msra.mxu0 0.0
        %557 = vmatpush.msra.mxu0 0.0
        %558 = vmatpush.msra.mxu0 0.0
        %559 = vmatpush.msra.mxu0 0.0
        %560 = vmatpush.msra.mxu0 0.0
        %561 = vmatpush.msra.mxu0 0.0
        %562 = vmatpush.msra.mxu0 0.0
        %563 = vmatpush.msra.mxu0 0.0
        %564 = vmatpush.msra.mxu0 0.0
        %565 = vmatpush.msra.mxu0 0.0
        %566 = vmatpush.msra.mxu0 0.0
        %567 = vmatpush.msra.mxu0 0.0
        %568 = vmatpush.msra.mxu0 0.0
        %569 = vmatpush.msra.mxu0 0.0
        %570 = vmatpush.msra.mxu0 0.0
        %v571 = vand.u32 %v554, 4294901760
        %572 = vmatpush.msra.mxu0 %v571
        %v573 = vand.u32 %v545, 4294901760
        %v574 = vsub.f32 %v545, %v573
        %v575 = vand.u32 %v574, 4294901760
        %v576 = vsub.f32 %v574, %v575
        %v577 = vand.u32 %v576, 4294901760
        %578 = vmatmul.f32.gmra.mxu0 %v577
        %v579 = vpop.f32.mrf.mxu0
        %v580 = vadd.f32 %v531, %v579
        %v581 = vand.u32 %v547, 4294901760
        %v582 = vsub.f32 %v547, %v581
        %v583 = vand.u32 %v582, 4294901760
        %v584 = vsub.f32 %v582, %v583
        %v585 = vand.u32 %v584, 4294901760
        %586 = vmatmul.f32.gmra.mxu0 %v585
        %v587 = vpop.f32.mrf.mxu0
        %v588 = vadd.f32 %v535, %v587
        %v589 = vand.u32 %v549, 4294901760
        %v590 = vsub.f32 %v549, %v589
        %v591 = vand.u32 %v590, 4294901760
        %v592 = vsub.f32 %v590, %v591
        %v593 = vand.u32 %v592, 4294901760
        %594 = vmatmul.f32.gmra.mxu0 %v593
        %v595 = vpop.f32.mrf.mxu0
        %v596 = vadd.f32 %v539, %v595
        %v597 = vand.u32 %v551, 4294901760
        %v598 = vsub.f32 %v551, %v597
        %v599 = vand.u32 %v598, 4294901760
        %v600 = vsub.f32 %v598, %v599
        %v601 = vand.u32 %v600, 4294901760
        %602 = vmatmul.f32.gmra.mxu0 %v601
        %v603 = vpop.f32.mrf.mxu0
        %v604 = vadd.f32 %v543, %v603
        %605 = vdwg.mxu0
        %606 = vmatpush.msra.mxu0 0.0
        %607 = vmatpush.msra.mxu0 0.0
        %608 = vmatpush.msra.mxu0 0.0
        %609 = vmatpush.msra.mxu0 0.0
        %610 = vmatpush.msra.mxu0 0.0
        %611 = vmatpush.msra.mxu0 0.0
        %612 = vmatpush.msra.mxu0 0.0
        %613 = vmatpush.msra.mxu0 0.0
        %614 = vmatpush.msra.mxu0 0.0
        %615 = vmatpush.msra.mxu0 0.0
        %616 = vmatpush.msra.mxu0 0.0
        %617 = vmatpush.msra.mxu0 0.0
        %618 = vmatpush.msra.mxu0 0.0
        %619 = vmatpush.msra.mxu0 0.0
        %620 = vmatpush.msra.mxu0 0.0
        %v621 = vand.u32 %v554, 4294901760
        %v622 = vsub.f32 %v554, %v621
        %v623 = vand.u32 %v622, 4294901760
        %v624 = vsub.f32 %v622, %v623
        %v625 = vand.u32 %v624, 4294901760
        %626 = vmatpush.msra.mxu0 %v625
        %v627 = vand.u32 %v545, 4294901760
        %628 = vmatmul.f32.gmra.mxu0 %v627
        %v629 = vpop.f32.mrf.mxu0
        %v630 = vadd.f32 %v580, %v629
        %v631 = vand.u32 %v547, 4294901760
        %632 = vmatmul.f32.gmra.mxu0 %v631
        %v633 = vpop.f32.mrf.mxu0
        %v634 = vadd.f32 %v588, %v633
        %v635 = vand.u32 %v549, 4294901760
        %636 = vmatmul.f32.gmra.mxu0 %v635
        %v637 = vpop.f32.mrf.mxu0
        %v638 = vadd.f32 %v596, %v637
        %v639 = vand.u32 %v551, 4294901760
        %640 = vmatmul.f32.gmra.mxu0 %v639
        %v641 = vpop.f32.mrf.mxu0
        %v642 = vadd.f32 %v604, %v641
        %643 = vdwg.mxu0
        %644 = vmatpush.msra.mxu0 0.0
        %645 = vmatpush.msra.mxu0 0.0
        %646 = vmatpush.msra.mxu0 0.0
        %647 = vmatpush.msra.mxu0 0.0
        %648 = vmatpush.msra.mxu0 0.0
        %649 = vmatpush.msra.mxu0 0.0
        %650 = vmatpush.msra.mxu0 0.0
        %651 = vmatpush.msra.mxu0 0.0
        %652 = vmatpush.msra.mxu0 0.0
        %653 = vmatpush.msra.mxu0 0.0
        %654 = vmatpush.msra.mxu0 0.0
        %655 = vmatpush.msra.mxu0 0.0
        %656 = vmatpush.msra.mxu0 0.0
        %657 = vmatpush.msra.mxu0 0.0
        %658 = vmatpush.msra.mxu0 0.0
        %v659 = vand.u32 %v554, 4294901760
        %v660 = vsub.f32 %v554, %v659
        %661 = vmatpush.msra.mxu0 %v660
        %v662 = vand.u32 %v545, 4294901760
        %v663 = vsub.f32 %v545, %v662
        %664 = vmatmul.f32.gmra.mxu0 %v663
        %v665 = vpop.f32.mrf.mxu0
        %v666 = vadd.f32 %v630, %v665
        %v667 = vand.u32 %v547, 4294901760
        %v668 = vsub.f32 %v547, %v667
        %669 = vmatmul.f32.gmra.mxu0 %v668
        %v670 = vpop.f32.mrf.mxu0
        %v671 = vadd.f32 %v634, %v670
        %v672 = vand.u32 %v549, 4294901760
        %v673 = vsub.f32 %v549, %v672
        %674 = vmatmul.f32.gmra.mxu0 %v673
        %v675 = vpop.f32.mrf.mxu0
        %v676 = vadd.f32 %v638, %v675
        %v677 = vand.u32 %v551, 4294901760
        %v678 = vsub.f32 %v551, %v677
        %679 = vmatmul.f32.gmra.mxu0 %v678
        %v680 = vpop.f32.mrf.mxu0
        %v681 = vadd.f32 %v642, %v680
        %682 = vdwg.mxu0
        %683 = vmatpush.msra.mxu0 0.0
        %684 = vmatpush.msra.mxu0 0.0
        %685 = vmatpush.msra.mxu0 0.0
        %686 = vmatpush.msra.mxu0 0.0
        %687 = vmatpush.msra.mxu0 0.0
        %688 = vmatpush.msra.mxu0 0.0
        %689 = vmatpush.msra.mxu0 0.0
        %690 = vmatpush.msra.mxu0 0.0
        %691 = vmatpush.msra.mxu0 0.0
        %692 = vmatpush.msra.mxu0 0.0
        %693 = vmatpush.msra.mxu0 0.0
        %694 = vmatpush.msra.mxu0 0.0
        %695 = vmatpush.msra.mxu0 0.0
        %696 = vmatpush.msra.mxu0 0.0
        %697 = vmatpush.msra.mxu0 0.0
        %v698 = vand.u32 %v554, 4294901760
        %699 = vmatpush.msra.mxu0 %v698
        %v700 = vand.u32 %v545, 4294901760
        %v701 = vsub.f32 %v545, %v700
        %v702 = vand.u32 %v701, 4294901760
        %703 = vmatmul.f32.gmra.mxu0 %v702
        %v704 = vpop.f32.mrf.mxu0
        %v705 = vadd.f32 %v666, %v704
        %v706 = vand.u32 %v547, 4294901760
        %v707 = vsub.f32 %v547, %v706
        %v708 = vand.u32 %v707, 4294901760
        %709 = vmatmul.f32.gmra.mxu0 %v708
        %v710 = vpop.f32.mrf.mxu0
        %v711 = vadd.f32 %v671, %v710
        %v712 = vand.u32 %v549, 4294901760
        %v713 = vsub.f32 %v549, %v712
        %v714 = vand.u32 %v713, 4294901760
        %715 = vmatmul.f32.gmra.mxu0 %v714
        %v716 = vpop.f32.mrf.mxu0
        %v717 = vadd.f32 %v676, %v716
        %v718 = vand.u32 %v551, 4294901760
        %v719 = vsub.f32 %v551, %v718
        %v720 = vand.u32 %v719, 4294901760
        %721 = vmatmul.f32.gmra.mxu0 %v720
        %v722 = vpop.f32.mrf.mxu0
        %v723 = vadd.f32 %v681, %v722
        %724 = vdwg.mxu0
        %725 = vmatpush.msra.mxu0 0.0
        %726 = vmatpush.msra.mxu0 0.0
        %727 = vmatpush.msra.mxu0 0.0
        %728 = vmatpush.msra.mxu0 0.0
        %729 = vmatpush.msra.mxu0 0.0
        %730 = vmatpush.msra.mxu0 0.0
        %731 = vmatpush.msra.mxu0 0.0
        %732 = vmatpush.msra.mxu0 0.0
        %733 = vmatpush.msra.mxu0 0.0
        %734 = vmatpush.msra.mxu0 0.0
        %735 = vmatpush.msra.mxu0 0.0
        %736 = vmatpush.msra.mxu0 0.0
        %737 = vmatpush.msra.mxu0 0.0
        %738 = vmatpush.msra.mxu0 0.0
        %739 = vmatpush.msra.mxu0 0.0
        %v740 = vand.u32 %v554, 4294901760
        %v741 = vsub.f32 %v554, %v740
        %v742 = vand.u32 %v741, 4294901760
        %743 = vmatpush.msra.mxu0 %v742
        %v744 = vand.u32 %v545, 4294901760
        %745 = vmatmul.f32.gmra.mxu0 %v744
        %v746 = vpop.f32.mrf.mxu0
        %v747 = vadd.f32 %v705, %v746
        %v748 = vand.u32 %v547, 4294901760
        %749 = vmatmul.f32.gmra.mxu0 %v748
        %v750 = vpop.f32.mrf.mxu0
        %v751 = vadd.f32 %v711, %v750
        %v752 = vand.u32 %v549, 4294901760
        %753 = vmatmul.f32.gmra.mxu0 %v752
        %v754 = vpop.f32.mrf.mxu0
        %v755 = vadd.f32 %v717, %v754
        %v756 = vand.u32 %v551, 4294901760
        %757 = vmatmul.f32.gmra.mxu0 %v756
        %v758 = vpop.f32.mrf.mxu0
        %v759 = vadd.f32 %v723, %v758
        %760 = vdwg.mxu0
        %761 = vmatpush.msra.mxu0 0.0
        %762 = vmatpush.msra.mxu0 0.0
        %763 = vmatpush.msra.mxu0 0.0
        %764 = vmatpush.msra.mxu0 0.0
        %765 = vmatpush.msra.mxu0 0.0
        %766 = vmatpush.msra.mxu0 0.0
        %767 = vmatpush.msra.mxu0 0.0
        %768 = vmatpush.msra.mxu0 0.0
        %769 = vmatpush.msra.mxu0 0.0
        %770 = vmatpush.msra.mxu0 0.0
        %771 = vmatpush.msra.mxu0 0.0
        %772 = vmatpush.msra.mxu0 0.0
        %773 = vmatpush.msra.mxu0 0.0
        %774 = vmatpush.msra.mxu0 0.0
        %775 = vmatpush.msra.mxu0 0.0
        %v776 = vand.u32 %v554, 4294901760
        %777 = vmatpush.msra.mxu0 %v776
        %v778 = vand.u32 %v545, 4294901760
        %779 = vmatmul.f32.gmra.mxu0 %v778
        %v780 = vpop.f32.mrf.mxu0
        %v781 = vadd.f32 %v747, %v780
        %v782 = vand.u32 %v547, 4294901760
        %783 = vmatmul.f32.gmra.mxu0 %v782
        %v784 = vpop.f32.mrf.mxu0
        %v785 = vadd.f32 %v751, %v784
        %v786 = vand.u32 %v549, 4294901760
        %787 = vmatmul.f32.gmra.mxu0 %v786
        %v788 = vpop.f32.mrf.mxu0
        %v789 = vadd.f32 %v755, %v788
        %v790 = vand.u32 %v551, 4294901760
        %791 = vmatmul.f32.gmra.mxu0 %v790
        %v792 = vpop.f32.mrf.mxu0
        %v793 = vadd.f32 %v759, %v792
        %794 = vdwg.mxu0
        %s795 = scalar_lea.vmem %s2, 8
        %v796 = vld [vmem:[%s795] sm:$0xf]
        %vm797 = vcmask 1045504
        %v798 = vrot.slane %v270, 2
        %v799 = vrot.slane %v271, 2
        %v800 = vsel %vm797, %v798, %v799
        %v801 = vrot.slane %v272, 2
        %v802 = vsel %vm797, %v799, %v801
        %v803 = vrot.slane %v273, 2
        %v804 = vsel %vm797, %v801, %v803
        %v805 = vrot.slane %v274, 2
        %v806 = vsel %vm797, %v803, %v805
        %v807 = vsel %vm293, %v800, 0
        %v809 = vsel %vm293, %v802, 0
        %v811 = vsel %vm293, %v804, 0
        %v813 = vsel %vm293, %v806, 0
        %v816 = vsel %vm302, %v796, 0
        %818 = vmatpush.msra.mxu0 0.0
        %819 = vmatpush.msra.mxu0 0.0
        %820 = vmatpush.msra.mxu0 0.0
        %821 = vmatpush.msra.mxu0 0.0
        %822 = vmatpush.msra.mxu0 0.0
        %823 = vmatpush.msra.mxu0 0.0
        %824 = vmatpush.msra.mxu0 0.0
        %825 = vmatpush.msra.mxu0 0.0
        %826 = vmatpush.msra.mxu0 0.0
        %827 = vmatpush.msra.mxu0 0.0
        %828 = vmatpush.msra.mxu0 0.0
        %829 = vmatpush.msra.mxu0 0.0
        %830 = vmatpush.msra.mxu0 0.0
        %831 = vmatpush.msra.mxu0 0.0
        %832 = vmatpush.msra.mxu0 0.0
        %v833 = vand.u32 %v816, 4294901760
        %834 = vmatpush.msra.mxu0 %v833
        %v835 = vand.u32 %v807, 4294901760
        %v836 = vsub.f32 %v807, %v835
        %v837 = vand.u32 %v836, 4294901760
        %v838 = vsub.f32 %v836, %v837
        %v839 = vand.u32 %v838, 4294901760
        %840 = vmatmul.f32.gmra.mxu0 %v839
        %v841 = vpop.f32.mrf.mxu0
        %v842 = vadd.f32 0.0, %v841
        %v843 = vand.u32 %v809, 4294901760
        %v844 = vsub.f32 %v809, %v843
        %v845 = vand.u32 %v844, 4294901760
        %v846 = vsub.f32 %v844, %v845
        %v847 = vand.u32 %v846, 4294901760
        %848 = vmatmul.f32.gmra.mxu0 %v847
        %v849 = vpop.f32.mrf.mxu0
        %v850 = vadd.f32 0.0, %v849
        %v851 = vand.u32 %v811, 4294901760
        %v852 = vsub.f32 %v811, %v851
        %v853 = vand.u32 %v852, 4294901760
        %v854 = vsub.f32 %v852, %v853
        %v855 = vand.u32 %v854, 4294901760
        %856 = vmatmul.f32.gmra.mxu0 %v855
        %v857 = vpop.f32.mrf.mxu0
        %v858 = vadd.f32 0.0, %v857
        %v859 = vand.u32 %v813, 4294901760
        %v860 = vsub.f32 %v813, %v859
        %v861 = vand.u32 %v860, 4294901760
        %v862 = vsub.f32 %v860, %v861
        %v863 = vand.u32 %v862, 4294901760
        %864 = vmatmul.f32.gmra.mxu0 %v863
        %v865 = vpop.f32.mrf.mxu0
        %v866 = vadd.f32 0.0, %v865
        %867 = vdwg.mxu0
        %868 = vmatpush.msra.mxu0 0.0
        %869 = vmatpush.msra.mxu0 0.0
        %870 = vmatpush.msra.mxu0 0.0
        %871 = vmatpush.msra.mxu0 0.0
        %872 = vmatpush.msra.mxu0 0.0
        %873 = vmatpush.msra.mxu0 0.0
        %874 = vmatpush.msra.mxu0 0.0
        %875 = vmatpush.msra.mxu0 0.0
        %876 = vmatpush.msra.mxu0 0.0
        %877 = vmatpush.msra.mxu0 0.0
        %878 = vmatpush.msra.mxu0 0.0
        %879 = vmatpush.msra.mxu0 0.0
        %880 = vmatpush.msra.mxu0 0.0
        %881 = vmatpush.msra.mxu0 0.0
        %882 = vmatpush.msra.mxu0 0.0
        %v883 = vand.u32 %v816, 4294901760
        %v884 = vsub.f32 %v816, %v883
        %v885 = vand.u32 %v884, 4294901760
        %v886 = vsub.f32 %v884, %v885
        %v887 = vand.u32 %v886, 4294901760
        %888 = vmatpush.msra.mxu0 %v887
        %v889 = vand.u32 %v807, 4294901760
        %890 = vmatmul.f32.gmra.mxu0 %v889
        %v891 = vpop.f32.mrf.mxu0
        %v892 = vadd.f32 %v842, %v891
        %v893 = vand.u32 %v809, 4294901760
        %894 = vmatmul.f32.gmra.mxu0 %v893
        %v895 = vpop.f32.mrf.mxu0
        %v896 = vadd.f32 %v850, %v895
        %v897 = vand.u32 %v811, 4294901760
        %898 = vmatmul.f32.gmra.mxu0 %v897
        %v899 = vpop.f32.mrf.mxu0
        %v900 = vadd.f32 %v858, %v899
        %v901 = vand.u32 %v813, 4294901760
        %902 = vmatmul.f32.gmra.mxu0 %v901
        %v903 = vpop.f32.mrf.mxu0
        %v904 = vadd.f32 %v866, %v903
        %905 = vdwg.mxu0
        %906 = vmatpush.msra.mxu0 0.0
        %907 = vmatpush.msra.mxu0 0.0
        %908 = vmatpush.msra.mxu0 0.0
        %909 = vmatpush.msra.mxu0 0.0
        %910 = vmatpush.msra.mxu0 0.0
        %911 = vmatpush.msra.mxu0 0.0
        %912 = vmatpush.msra.mxu0 0.0
        %913 = vmatpush.msra.mxu0 0.0
        %914 = vmatpush.msra.mxu0 0.0
        %915 = vmatpush.msra.mxu0 0.0
        %916 = vmatpush.msra.mxu0 0.0
        %917 = vmatpush.msra.mxu0 0.0
        %918 = vmatpush.msra.mxu0 0.0
        %919 = vmatpush.msra.mxu0 0.0
        %920 = vmatpush.msra.mxu0 0.0
        %v921 = vand.u32 %v816, 4294901760
        %v922 = vsub.f32 %v816, %v921
        %923 = vmatpush.msra.mxu0 %v922
        %v924 = vand.u32 %v807, 4294901760
        %v925 = vsub.f32 %v807, %v924
        %926 = vmatmul.f32.gmra.mxu0 %v925
        %v927 = vpop.f32.mrf.mxu0
        %v928 = vadd.f32 %v892, %v927
        %v929 = vand.u32 %v809, 4294901760
        %v930 = vsub.f32 %v809, %v929
        %931 = vmatmul.f32.gmra.mxu0 %v930
        %v932 = vpop.f32.mrf.mxu0
        %v933 = vadd.f32 %v896, %v932
        %v934 = vand.u32 %v811, 4294901760
        %v935 = vsub.f32 %v811, %v934
        %936 = vmatmul.f32.gmra.mxu0 %v935
        %v937 = vpop.f32.mrf.mxu0
        %v938 = vadd.f32 %v900, %v937
        %v939 = vand.u32 %v813, 4294901760
        %v940 = vsub.f32 %v813, %v939
        %941 = vmatmul.f32.gmra.mxu0 %v940
        %v942 = vpop.f32.mrf.mxu0
        %v943 = vadd.f32 %v904, %v942
        %944 = vdwg.mxu0
        %945 = vmatpush.msra.mxu0 0.0
        %946 = vmatpush.msra.mxu0 0.0
        %947 = vmatpush.msra.mxu0 0.0
        %948 = vmatpush.msra.mxu0 0.0
        %949 = vmatpush.msra.mxu0 0.0
        %950 = vmatpush.msra.mxu0 0.0
        %951 = vmatpush.msra.mxu0 0.0
        %952 = vmatpush.msra.mxu0 0.0
        %953 = vmatpush.msra.mxu0 0.0
        %954 = vmatpush.msra.mxu0 0.0
        %955 = vmatpush.msra.mxu0 0.0
        %956 = vmatpush.msra.mxu0 0.0
        %957 = vmatpush.msra.mxu0 0.0
        %958 = vmatpush.msra.mxu0 0.0
        %959 = vmatpush.msra.mxu0 0.0
        %v960 = vand.u32 %v816, 4294901760
        %961 = vmatpush.msra.mxu0 %v960
        %v962 = vand.u32 %v807, 4294901760
        %v963 = vsub.f32 %v807, %v962
        %v964 = vand.u32 %v963, 4294901760
        %965 = vmatmul.f32.gmra.mxu0 %v964
        %v966 = vpop.f32.mrf.mxu0
        %v967 = vadd.f32 %v928, %v966
        %v968 = vand.u32 %v809, 4294901760
        %v969 = vsub.f32 %v809, %v968
        %v970 = vand.u32 %v969, 4294901760
        %971 = vmatmul.f32.gmra.mxu0 %v970
        %v972 = vpop.f32.mrf.mxu0
        %v973 = vadd.f32 %v933, %v972
        %v974 = vand.u32 %v811, 4294901760
        %v975 = vsub.f32 %v811, %v974
        %v976 = vand.u32 %v975, 4294901760
        %977 = vmatmul.f32.gmra.mxu0 %v976
        %v978 = vpop.f32.mrf.mxu0
        %v979 = vadd.f32 %v938, %v978
        %v980 = vand.u32 %v813, 4294901760
        %v981 = vsub.f32 %v813, %v980
        %v982 = vand.u32 %v981, 4294901760
        %983 = vmatmul.f32.gmra.mxu0 %v982
        %v984 = vpop.f32.mrf.mxu0
        %v985 = vadd.f32 %v943, %v984
        %986 = vdwg.mxu0
        %987 = vmatpush.msra.mxu0 0.0
        %988 = vmatpush.msra.mxu0 0.0
        %989 = vmatpush.msra.mxu0 0.0
        %990 = vmatpush.msra.mxu0 0.0
        %991 = vmatpush.msra.mxu0 0.0
        %992 = vmatpush.msra.mxu0 0.0
        %993 = vmatpush.msra.mxu0 0.0
        %994 = vmatpush.msra.mxu0 0.0
        %995 = vmatpush.msra.mxu0 0.0
        %996 = vmatpush.msra.mxu0 0.0
        %997 = vmatpush.msra.mxu0 0.0
        %998 = vmatpush.msra.mxu0 0.0
        %999 = vmatpush.msra.mxu0 0.0
        %1000 = vmatpush.msra.mxu0 0.0
        %1001 = vmatpush.msra.mxu0 0.0
        %v1002 = vand.u32 %v816, 4294901760
        %v1003 = vsub.f32 %v816, %v1002
        %v1004 = vand.u32 %v1003, 4294901760
        %1005 = vmatpush.msra.mxu0 %v1004
        %v1006 = vand.u32 %v807, 4294901760
        %1007 = vmatmul.f32.gmra.mxu0 %v1006
        %v1008 = vpop.f32.mrf.mxu0
        %v1009 = vadd.f32 %v967, %v1008
        %v1010 = vand.u32 %v809, 4294901760
        %1011 = vmatmul.f32.gmra.mxu0 %v1010
        %v1012 = vpop.f32.mrf.mxu0
        %v1013 = vadd.f32 %v973, %v1012
        %v1014 = vand.u32 %v811, 4294901760
        %1015 = vmatmul.f32.gmra.mxu0 %v1014
        %v1016 = vpop.f32.mrf.mxu0
        %v1017 = vadd.f32 %v979, %v1016
        %v1018 = vand.u32 %v813, 4294901760
        %1019 = vmatmul.f32.gmra.mxu0 %v1018
        %v1020 = vpop.f32.mrf.mxu0
        %v1021 = vadd.f32 %v985, %v1020
        %1022 = vdwg.mxu0
        %1023 = vmatpush.msra.mxu0 0.0
        %1024 = vmatpush.msra.mxu0 0.0
        %1025 = vmatpush.msra.mxu0 0.0
        %1026 = vmatpush.msra.mxu0 0.0
        %1027 = vmatpush.msra.mxu0 0.0
        %1028 = vmatpush.msra.mxu0 0.0
        %1029 = vmatpush.msra.mxu0 0.0
        %1030 = vmatpush.msra.mxu0 0.0
        %1031 = vmatpush.msra.mxu0 0.0
        %1032 = vmatpush.msra.mxu0 0.0
        %1033 = vmatpush.msra.mxu0 0.0
        %1034 = vmatpush.msra.mxu0 0.0
        %1035 = vmatpush.msra.mxu0 0.0
        %1036 = vmatpush.msra.mxu0 0.0
        %1037 = vmatpush.msra.mxu0 0.0
        %v1038 = vand.u32 %v816, 4294901760
        %1039 = vmatpush.msra.mxu0 %v1038
        %v1040 = vand.u32 %v807, 4294901760
        %1041 = vmatmul.f32.gmra.mxu0 %v1040
        %v1042 = vpop.f32.mrf.mxu0
        %v1043 = vadd.f32 %v1009, %v1042
        %v1044 = vand.u32 %v809, 4294901760
        %1045 = vmatmul.f32.gmra.mxu0 %v1044
        %v1046 = vpop.f32.mrf.mxu0
        %v1047 = vadd.f32 %v1013, %v1046
        %v1048 = vand.u32 %v811, 4294901760
        %1049 = vmatmul.f32.gmra.mxu0 %v1048
        %v1050 = vpop.f32.mrf.mxu0
        %v1051 = vadd.f32 %v1017, %v1050
        %v1052 = vand.u32 %v813, 4294901760
        %1053 = vmatmul.f32.gmra.mxu0 %v1052
        %v1054 = vpop.f32.mrf.mxu0
        %v1055 = vadd.f32 %v1021, %v1054
        %1056 = vdwg.mxu0
        %v1057 = vadd.f32 %v781, %v1043
        %v1058 = vadd.f32 %v785, %v1047
        %v1059 = vadd.f32 %v789, %v1051
        %v1060 = vadd.f32 %v793, %v1055
        %s1061 = scalar_lea.vmem %s2, 12
        %v1062 = vld [vmem:[%s1061] sm:$0xf]
        %vm1063 = vcmask 1044480
        %v1064 = vrot.slane %v270, 3
        %v1065 = vrot.slane %v271, 3
        %v1066 = vsel %vm1063, %v1064, %v1065
        %v1067 = vrot.slane %v272, 3
        %v1068 = vsel %vm1063, %v1065, %v1067
        %v1069 = vrot.slane %v273, 3
        %v1070 = vsel %vm1063, %v1067, %v1069
        %v1071 = vrot.slane %v274, 3
        %v1072 = vsel %vm1063, %v1069, %v1071
        %v1073 = vsel %vm293, %v1066, 0
        %v1075 = vsel %vm293, %v1068, 0
        %v1077 = vsel %vm293, %v1070, 0
        %v1079 = vsel %vm293, %v1072, 0
        %v1082 = vsel %vm302, %v1062, 0
        %1084 = vmatpush.msra.mxu0 0.0
        %1085 = vmatpush.msra.mxu0 0.0
        %1086 = vmatpush.msra.mxu0 0.0
        %1087 = vmatpush.msra.mxu0 0.0
        %1088 = vmatpush.msra.mxu0 0.0
        %1089 = vmatpush.msra.mxu0 0.0
        %1090 = vmatpush.msra.mxu0 0.0
        %1091 = vmatpush.msra.mxu0 0.0
        %1092 = vmatpush.msra.mxu0 0.0
        %1093 = vmatpush.msra.mxu0 0.0
        %1094 = vmatpush.msra.mxu0 0.0
        %1095 = vmatpush.msra.mxu0 0.0
        %1096 = vmatpush.msra.mxu0 0.0
        %1097 = vmatpush.msra.mxu0 0.0
        %1098 = vmatpush.msra.mxu0 0.0
        %v1099 = vand.u32 %v1082, 4294901760
        %1100 = vmatpush.msra.mxu0 %v1099
        %v1101 = vand.u32 %v1073, 4294901760
        %v1102 = vsub.f32 %v1073, %v1101
        %v1103 = vand.u32 %v1102, 4294901760
        %v1104 = vsub.f32 %v1102, %v1103
        %v1105 = vand.u32 %v1104, 4294901760
        %1106 = vmatmul.f32.gmra.mxu0 %v1105
        %v1107 = vpop.f32.mrf.mxu0
        %v1108 = vadd.f32 0.0, %v1107
        %v1109 = vand.u32 %v1075, 4294901760
        %v1110 = vsub.f32 %v1075, %v1109
        %v1111 = vand.u32 %v1110, 4294901760
        %v1112 = vsub.f32 %v1110, %v1111
        %v1113 = vand.u32 %v1112, 4294901760
        %1114 = vmatmul.f32.gmra.mxu0 %v1113
        %v1115 = vpop.f32.mrf.mxu0
        %v1116 = vadd.f32 0.0, %v1115
        %v1117 = vand.u32 %v1077, 4294901760
        %v1118 = vsub.f32 %v1077, %v1117
        %v1119 = vand.u32 %v1118, 4294901760
        %v1120 = vsub.f32 %v1118, %v1119
        %v1121 = vand.u32 %v1120, 4294901760
        %1122 = vmatmul.f32.gmra.mxu0 %v1121
        %v1123 = vpop.f32.mrf.mxu0
        %v1124 = vadd.f32 0.0, %v1123
        %v1125 = vand.u32 %v1079, 4294901760
        %v1126 = vsub.f32 %v1079, %v1125
        %v1127 = vand.u32 %v1126, 4294901760
        %v1128 = vsub.f32 %v1126, %v1127
        %v1129 = vand.u32 %v1128, 4294901760
        %1130 = vmatmul.f32.gmra.mxu0 %v1129
        %v1131 = vpop.f32.mrf.mxu0
        %v1132 = vadd.f32 0.0, %v1131
        %1133 = vdwg.mxu0
        %1134 = vmatpush.msra.mxu0 0.0
        %1135 = vmatpush.msra.mxu0 0.0
        %1136 = vmatpush.msra.mxu0 0.0
        %1137 = vmatpush.msra.mxu0 0.0
        %1138 = vmatpush.msra.mxu0 0.0
        %1139 = vmatpush.msra.mxu0 0.0
        %1140 = vmatpush.msra.mxu0 0.0
        %1141 = vmatpush.msra.mxu0 0.0
        %1142 = vmatpush.msra.mxu0 0.0
        %1143 = vmatpush.msra.mxu0 0.0
        %1144 = vmatpush.msra.mxu0 0.0
        %1145 = vmatpush.msra.mxu0 0.0
        %1146 = vmatpush.msra.mxu0 0.0
        %1147 = vmatpush.msra.mxu0 0.0
        %1148 = vmatpush.msra.mxu0 0.0
        %v1149 = vand.u32 %v1082, 4294901760
        %v1150 = vsub.f32 %v1082, %v1149
        %v1151 = vand.u32 %v1150, 4294901760
        %v1152 = vsub.f32 %v1150, %v1151
        %v1153 = vand.u32 %v1152, 4294901760
        %1154 = vmatpush.msra.mxu0 %v1153
        %v1155 = vand.u32 %v1073, 4294901760
        %1156 = vmatmul.f32.gmra.mxu0 %v1155
        %v1157 = vpop.f32.mrf.mxu0
        %v1158 = vadd.f32 %v1108, %v1157
        %v1159 = vand.u32 %v1075, 4294901760
        %1160 = vmatmul.f32.gmra.mxu0 %v1159
        %v1161 = vpop.f32.mrf.mxu0
        %v1162 = vadd.f32 %v1116, %v1161
        %v1163 = vand.u32 %v1077, 4294901760
        %1164 = vmatmul.f32.gmra.mxu0 %v1163
        %v1165 = vpop.f32.mrf.mxu0
        %v1166 = vadd.f32 %v1124, %v1165
        %v1167 = vand.u32 %v1079, 4294901760
        %1168 = vmatmul.f32.gmra.mxu0 %v1167
        %v1169 = vpop.f32.mrf.mxu0
        %v1170 = vadd.f32 %v1132, %v1169
        %1171 = vdwg.mxu0
        %1172 = vmatpush.msra.mxu0 0.0
        %1173 = vmatpush.msra.mxu0 0.0
        %1174 = vmatpush.msra.mxu0 0.0
        %1175 = vmatpush.msra.mxu0 0.0
        %1176 = vmatpush.msra.mxu0 0.0
        %1177 = vmatpush.msra.mxu0 0.0
        %1178 = vmatpush.msra.mxu0 0.0
        %1179 = vmatpush.msra.mxu0 0.0
        %1180 = vmatpush.msra.mxu0 0.0
        %1181 = vmatpush.msra.mxu0 0.0
        %1182 = vmatpush.msra.mxu0 0.0
        %1183 = vmatpush.msra.mxu0 0.0
        %1184 = vmatpush.msra.mxu0 0.0
        %1185 = vmatpush.msra.mxu0 0.0
        %1186 = vmatpush.msra.mxu0 0.0
        %v1187 = vand.u32 %v1082, 4294901760
        %v1188 = vsub.f32 %v1082, %v1187
        %1189 = vmatpush.msra.mxu0 %v1188
        %v1190 = vand.u32 %v1073, 4294901760
        %v1191 = vsub.f32 %v1073, %v1190
        %1192 = vmatmul.f32.gmra.mxu0 %v1191
        %v1193 = vpop.f32.mrf.mxu0
        %v1194 = vadd.f32 %v1158, %v1193
        %v1195 = vand.u32 %v1075, 4294901760
        %v1196 = vsub.f32 %v1075, %v1195
        %1197 = vmatmul.f32.gmra.mxu0 %v1196
        %v1198 = vpop.f32.mrf.mxu0
        %v1199 = vadd.f32 %v1162, %v1198
        %v1200 = vand.u32 %v1077, 4294901760
        %v1201 = vsub.f32 %v1077, %v1200
        %1202 = vmatmul.f32.gmra.mxu0 %v1201
        %v1203 = vpop.f32.mrf.mxu0
        %v1204 = vadd.f32 %v1166, %v1203
        %v1205 = vand.u32 %v1079, 4294901760
        %v1206 = vsub.f32 %v1079, %v1205
        %1207 = vmatmul.f32.gmra.mxu0 %v1206
        %v1208 = vpop.f32.mrf.mxu0
        %v1209 = vadd.f32 %v1170, %v1208
        %1210 = vdwg.mxu0
        %1211 = vmatpush.msra.mxu0 0.0
        %1212 = vmatpush.msra.mxu0 0.0
        %1213 = vmatpush.msra.mxu0 0.0
        %1214 = vmatpush.msra.mxu0 0.0
        %1215 = vmatpush.msra.mxu0 0.0
        %1216 = vmatpush.msra.mxu0 0.0
        %1217 = vmatpush.msra.mxu0 0.0
        %1218 = vmatpush.msra.mxu0 0.0
        %1219 = vmatpush.msra.mxu0 0.0
        %1220 = vmatpush.msra.mxu0 0.0
        %1221 = vmatpush.msra.mxu0 0.0
        %1222 = vmatpush.msra.mxu0 0.0
        %1223 = vmatpush.msra.mxu0 0.0
        %1224 = vmatpush.msra.mxu0 0.0
        %1225 = vmatpush.msra.mxu0 0.0
        %v1226 = vand.u32 %v1082, 4294901760
        %1227 = vmatpush.msra.mxu0 %v1226
        %v1228 = vand.u32 %v1073, 4294901760
        %v1229 = vsub.f32 %v1073, %v1228
        %v1230 = vand.u32 %v1229, 4294901760
        %1231 = vmatmul.f32.gmra.mxu0 %v1230
        %v1232 = vpop.f32.mrf.mxu0
        %v1233 = vadd.f32 %v1194, %v1232
        %v1234 = vand.u32 %v1075, 4294901760
        %v1235 = vsub.f32 %v1075, %v1234
        %v1236 = vand.u32 %v1235, 4294901760
        %1237 = vmatmul.f32.gmra.mxu0 %v1236
        %v1238 = vpop.f32.mrf.mxu0
        %v1239 = vadd.f32 %v1199, %v1238
        %v1240 = vand.u32 %v1077, 4294901760
        %v1241 = vsub.f32 %v1077, %v1240
        %v1242 = vand.u32 %v1241, 4294901760
        %1243 = vmatmul.f32.gmra.mxu0 %v1242
        %v1244 = vpop.f32.mrf.mxu0
        %v1245 = vadd.f32 %v1204, %v1244
        %v1246 = vand.u32 %v1079, 4294901760
        %v1247 = vsub.f32 %v1079, %v1246
        %v1248 = vand.u32 %v1247, 4294901760
        %1249 = vmatmul.f32.gmra.mxu0 %v1248
        %v1250 = vpop.f32.mrf.mxu0
        %v1251 = vadd.f32 %v1209, %v1250
        %1252 = vdwg.mxu0
        %1253 = vmatpush.msra.mxu0 0.0
        %1254 = vmatpush.msra.mxu0 0.0
        %1255 = vmatpush.msra.mxu0 0.0
        %1256 = vmatpush.msra.mxu0 0.0
        %1257 = vmatpush.msra.mxu0 0.0
        %1258 = vmatpush.msra.mxu0 0.0
        %1259 = vmatpush.msra.mxu0 0.0
        %1260 = vmatpush.msra.mxu0 0.0
        %1261 = vmatpush.msra.mxu0 0.0
        %1262 = vmatpush.msra.mxu0 0.0
        %1263 = vmatpush.msra.mxu0 0.0
        %1264 = vmatpush.msra.mxu0 0.0
        %1265 = vmatpush.msra.mxu0 0.0
        %1266 = vmatpush.msra.mxu0 0.0
        %1267 = vmatpush.msra.mxu0 0.0
        %v1268 = vand.u32 %v1082, 4294901760
        %v1269 = vsub.f32 %v1082, %v1268
        %v1270 = vand.u32 %v1269, 4294901760
        %1271 = vmatpush.msra.mxu0 %v1270
        %v1272 = vand.u32 %v1073, 4294901760
        %1273 = vmatmul.f32.gmra.mxu0 %v1272
        %v1274 = vpop.f32.mrf.mxu0
        %v1275 = vadd.f32 %v1233, %v1274
        %v1276 = vand.u32 %v1075, 4294901760
        %1277 = vmatmul.f32.gmra.mxu0 %v1276
        %v1278 = vpop.f32.mrf.mxu0
        %v1279 = vadd.f32 %v1239, %v1278
        %v1280 = vand.u32 %v1077, 4294901760
        %1281 = vmatmul.f32.gmra.mxu0 %v1280
        %v1282 = vpop.f32.mrf.mxu0
        %v1283 = vadd.f32 %v1245, %v1282
        %v1284 = vand.u32 %v1079, 4294901760
        %1285 = vmatmul.f32.gmra.mxu0 %v1284
        %v1286 = vpop.f32.mrf.mxu0
        %v1287 = vadd.f32 %v1251, %v1286
        %1288 = vdwg.mxu0
        %1289 = vmatpush.msra.mxu0 0.0
        %1290 = vmatpush.msra.mxu0 0.0
        %1291 = vmatpush.msra.mxu0 0.0
        %1292 = vmatpush.msra.mxu0 0.0
        %1293 = vmatpush.msra.mxu0 0.0
        %1294 = vmatpush.msra.mxu0 0.0
        %1295 = vmatpush.msra.mxu0 0.0
        %1296 = vmatpush.msra.mxu0 0.0
        %1297 = vmatpush.msra.mxu0 0.0
        %1298 = vmatpush.msra.mxu0 0.0
        %1299 = vmatpush.msra.mxu0 0.0
        %1300 = vmatpush.msra.mxu0 0.0
        %1301 = vmatpush.msra.mxu0 0.0
        %1302 = vmatpush.msra.mxu0 0.0
        %1303 = vmatpush.msra.mxu0 0.0
        %v1304 = vand.u32 %v1082, 4294901760
        %1305 = vmatpush.msra.mxu0 %v1304
        %v1306 = vand.u32 %v1073, 4294901760
        %1307 = vmatmul.f32.gmra.mxu0 %v1306
        %v1308 = vpop.f32.mrf.mxu0
        %v1309 = vadd.f32 %v1275, %v1308
        %v1310 = vand.u32 %v1075, 4294901760
        %1311 = vmatmul.f32.gmra.mxu0 %v1310
        %v1312 = vpop.f32.mrf.mxu0
        %v1313 = vadd.f32 %v1279, %v1312
        %v1314 = vand.u32 %v1077, 4294901760
        %1315 = vmatmul.f32.gmra.mxu0 %v1314
        %v1316 = vpop.f32.mrf.mxu0
        %v1317 = vadd.f32 %v1283, %v1316
        %v1318 = vand.u32 %v1079, 4294901760
        %1319 = vmatmul.f32.gmra.mxu0 %v1318
        %v1320 = vpop.f32.mrf.mxu0
        %v1321 = vadd.f32 %v1287, %v1320
        %1322 = vdwg.mxu0
        %v1323 = vadd.f32 %v1057, %v1309
        %v1324 = vadd.f32 %v1058, %v1313
        %v1325 = vadd.f32 %v1059, %v1317
        %v1326 = vadd.f32 %v1060, %v1321
        %1327 = vst [vmem:[%s236] sm:$0xff] %v1323
        %1328 = vst [vmem:[%s236 + $0x8] sm:$0xff] %v1324
        %1329 = vst [vmem:[%s236 + $0x10] sm:$0xff] %v1325
        %1330 = vst [vmem:[%s236 + $0x18] sm:$0xff] %v1326
        %s1331 = sand.u32 %s120, 1
        %s1332 = scalar_lea.sflag [#allocation3], %s1331
        %s1333 = sand.u32 %s120, 1
        %s1334 = smul.addr %s1333, 32
        %s1335 = scalar_lea.vmem [#allocation2], %s1334
        // Predicated region
        $region33: #{tpu_custom_call.1} parent=31 // pred_check
          %p1336 = pneg %p130
        $region34: #{tpu_custom_call.1} parent=31 // pred_check_branch
          %1338 = sbr.rel (%p1336) target = $region36
        $region35: #{tpu_custom_call.1} parent=31 // pred_region
          %s1339 = smul.u32 4, %s22
          %1341 = vsyncadd %s1332, 0
          %s1342 = smul.addr %s21, 4
          %s1343 = sadd.s32 %s1339, %s1342
          %s1344 = smul.addr %s1343, 8
          %s1345 = scalar_lea.hbm %s3, %s1344
          %s1346 = sshll.u32 %s1335, 4
          %s1347 = int_to_ptr.vmem [resolvable:$true] %s1346
          %s1348 = sshll.u32 %s1345, 4
          %s1349 = int_to_ptr.hbm [resolvable:$true] %s1348
          %1354 = dma.vmem_to_hbm [thread:$0]  %s1347, 512, %s1349, %s1332, 128, 128, 8
        $region36: #{tpu_custom_call.1} parent=31 // pred_fallthru
          _
      $region32: #{tpu_custom_call.1} parent=5 // pred_fallthru
        _
      %p1355 = scmp.le.s32.totalorder 2, %s12
      // Predicated region
      $region37: #{tpu_custom_call.1} parent=5 // pred_check
        %p1356 = pneg %p1355
      $region38: #{tpu_custom_call.1} parent=5 // pred_check_branch
        %1358 = sbr.rel (%p1356) target = $region40
      $region39: #{tpu_custom_call.1} parent=5 // pred_region
        %s1359 = ssub.s32 %s12, 2
        // Predicated region
        $region41: #{tpu_custom_call.1} parent=39 // pred_check
          %p1360 = pneg %p136
        $region42: #{tpu_custom_call.1} parent=39 // pred_check_branch
          %1362 = sbr.rel (%p1360) target = $region44
        $region43: #{tpu_custom_call.1} parent=39 // pred_region
          %s1363 = sand.u32 %s121, 1
          %s1364 = scalar_lea.sflag [#allocation3], %s1363
          %s1365 = sand.u32 %s121, 1
          %s1366 = smul.addr %s1365, 32
          %s1367 = scalar_lea.vmem [#allocation2], %s1366
          %1369 = dma.done %s1364, 512
        $region44: #{tpu_custom_call.1} parent=39 // pred_fallthru
          _
      $region40: #{tpu_custom_call.1} parent=5 // pred_fallthru
        _
    $region6: #{tpu_custom_call.1} parent=1 // loop_footer
      %s16 = sadd.s32 1, %s12
    $region7: #{tpu_custom_call.1} parent=1 // loop_footer_branch
      %11 = sbr.rel target = $region3
    $region8: #{tpu_custom_call.1} parent=1 // loop_exit
      _
    %1370 = vsyncpa [#allocation3], 1
    %s1371 = scalar_lea.sflag [#allocation3], 1
    %1372 = vsyncpa %s1371, 1

</llo_original>
